<compile_context>
chip_gen: v7x
topology: tpu7x:2x2x1
jax: 0.10.0
libtpu: 0.0.40
codegen_flags: <defaults>
</compile_context>

<pallas_src>
import jax
import jax.numpy as jnp
from jax import lax
from jax.experimental import pallas as pl
from jax.experimental.pallas import tpu as pltpu

STATE_DIM = 16
ACTION_DIM = 8
HIDDEN = (256, 256)

LOG_STD_MIN = -20.0
LOG_STD_MAX = 2.0

# Single ungridded block is cheapest up to here (grid-step overhead ~0.35us
# dominates the ~0.05us of MXU work per 256 rows of this tiny network).
SMALL_BATCH = 512
# Cap on the per-grid-step batch tile.  At 1024 rows the live f32 activations
# are ~2 MiB + ~0.3 MiB of weights -> far under v5e's 16 MiB scoped VMEM and
# v7x's 32 MiB scoped / 64 MiB physical, so no vmem_limit_bytes override needed.
MAX_TILE = 1024


def _round_up(x, m):
    return ((x + m - 1) // m) * m


def _policy_kernel(x_ref, w1_ref, b1_ref, w2_ref, b2_ref, wh_ref, bh_ref,
                   out_ref):
    # Matmuls run on the MXU with f32 accumulation; weights may be bf16.
    # All elementwise math (bias add / relu / clip / exp) stays f32.
    x = x_ref[...].astype(w1_ref.dtype)
    h1 = jnp.dot(x, w1_ref[...], preferred_element_type=jnp.float32) + b1_ref[...]
    h1 = jnp.maximum(h1, 0.0)
    h2 = jnp.dot(h1.astype(w2_ref.dtype), w2_ref[...],
                 preferred_element_type=jnp.float32) + b2_ref[...]
    h2 = jnp.maximum(h2, 0.0)
    # Fused [mu | log_std] head: one (H2, 2*A) matmul instead of two width-8 ones.
    head = jnp.dot(h2.astype(wh_ref.dtype), wh_ref[...],
                   preferred_element_type=jnp.float32) + bh_ref[...]
    # Columns [0, A) are mu (identity); columns [A, 2A) are log_std -> exp(clip).
    # Select with a column-iota mask instead of lane slices + concat; exp runs
    # on the EUP (separate bundle slot) so applying it to the whole slab is free.
    col = lax.broadcasted_iota(jnp.int32, head.shape, 1)
    std_half = jnp.exp(jnp.clip(head, LOG_STD_MIN, LOG_STD_MAX))
    out_ref[...] = jnp.where(col >= ACTION_DIM, std_half, head).astype(out_ref.dtype)


def _cost_estimate(batch, weight_dtype):
    n_w = (STATE_DIM * HIDDEN[0] + HIDDEN[0] * HIDDEN[1]
           + HIDDEN[1] * 2 * ACTION_DIM)
    flops = 2 * batch * n_w
    w_bytes = jnp.dtype(weight_dtype).itemsize * n_w
    b_bytes = 4 * (HIDDEN[0] + HIDDEN[1] + 2 * ACTION_DIM)
    io_bytes = 4 * batch * (STATE_DIM + 2 * ACTION_DIM)
    return pl.CostEstimate(flops=int(flops),
                           transcendentals=int(batch * 2 * ACTION_DIM),
                           bytes_accessed=int(w_bytes + b_bytes + io_bytes))


def stochastic_policy_forward(state, params):
    """state: (B, STATE_DIM) f32 -> (mu, std), each (B, ACTION_DIM) f32."""
    w1, b1, w2, b2, wh, bh = params
    B = state.shape[0]
    out_dtype = jnp.float32
    fused_shape = jax.ShapeDtypeStruct((B, 2 * ACTION_DIM), out_dtype)

    if B <= SMALL_BATCH:
        # Ungridded fast path: every operand lives whole in VMEM; no grid-step
        # overhead, arbitrary B allowed (block shape == full array shape).
        vmem = lambda: pl.BlockSpec(memory_space=pltpu.VMEM)
        fused = pl.pallas_call(
            _policy_kernel,
            out_shape=fused_shape,
            in_specs=[vmem() for _ in range(7)],
            out_specs=vmem(),
            cost_estimate=_cost_estimate(B, w1.dtype),
        )(state, w1, b1, w2, b2, wh, bh)
    else:
        # Batch-tiled grid path.  Tile sized so there are always >=2 blocks
        # (v7x megacore gets both TensorCores busy), capped at MAX_TILE.
        tb = min(MAX_TILE, _round_up(-(-B // 2), 8))
        n_blocks = pl.cdiv(B, tb)
        # Weights/biases: constant index_map -> VMEM-resident across the grid
        # (Pallas elides the re-DMA when the block index does not change).
        const = lambda shape: pl.BlockSpec(shape, lambda i: (0, 0))
        fused = pl.pallas_call(
            _policy_kernel,
            out_shape=fused_shape,
            grid=(n_blocks,),
            in_specs=[
                pl.BlockSpec((tb, STATE_DIM), lambda i: (i, 0)),   # x tile
                const((STATE_DIM, HIDDEN[0])),                      # w1
                const((1, HIDDEN[0])),                              # b1
                const((HIDDEN[0], HIDDEN[1])),                      # w2
                const((1, HIDDEN[1])),                              # b2
                const((HIDDEN[1], 2 * ACTION_DIM)),                 # fused head W
                const((1, 2 * ACTION_DIM)),                         # fused head b
            ],
            out_specs=pl.BlockSpec((tb, 2 * ACTION_DIM), lambda i: (i, 0)),
            compiler_params=pltpu.CompilerParams(
                dimension_semantics=("parallel",)),   # v7x: shard batch over 2 TCs
            cost_estimate=_cost_estimate(B, w1.dtype),
        )(state, w1, b1, w2, b2, wh, bh)

    # Split the fused [mu | std] slab in the wrapper (cheap, fusable slices).
    return fused[:, :ACTION_DIM], fused[:, ACTION_DIM:]


def init_params(key, weight_dtype=jnp.bfloat16):
    """PyTorch-style uniform(+/- 1/sqrt(fan_in)) init.

    Linear weights are stored transposed vs. torch: (in, out).  The mu and
    log_std heads are packed into one (HIDDEN[1], 2*ACTION_DIM) weight and a
    (1, 2*ACTION_DIM) bias for the fused head matmul.  Weights default to
    bf16 (native MXU input on all generations; halves weight DMA + VMEM
    residency) with f32 MXU accumulation; biases stay f32 since they are
    added to the f32 accumulator.
    """
    def linear(k, fan_in, fan_out):
        kw, kb = jax.random.split(k)
        bound = 1.0 / jnp.sqrt(fan_in)
        w = jax.random.uniform(kw, (fan_in, fan_out), jnp.float32, -bound, bound)
        b = jax.random.uniform(kb, (1, fan_out), jnp.float32, -bound, bound)
        return w, b

    k1, k2, k3, k4 = jax.random.split(key, 4)
    w1, b1 = linear(k1, STATE_DIM, HIDDEN[0])
    w2, b2 = linear(k2, HIDDEN[0], HIDDEN[1])
    wmu, bmu = linear(k3, HIDDEN[1], ACTION_DIM)
    wls, bls = linear(k4, HIDDEN[1], ACTION_DIM)
    wh = jnp.concatenate([wmu, wls], axis=1)
    bh = jnp.concatenate([bmu, bls], axis=1)
    w1 = w1.astype(weight_dtype)
    w2 = w2.astype(weight_dtype)
    wh = wh.astype(weight_dtype)
    return (w1, b1, w2, b2, wh, bh)


def reference_forward(state, params):
    w1, b1, w2, b2, wh, bh = [p.astype(jnp.float32) for p in params]
    h1 = jnp.maximum(state @ w1 + b1, 0.0)
    h2 = jnp.maximum(h1 @ w2 + b2, 0.0)
    head = h2 @ wh + bh
    mu = head[:, :ACTION_DIM]
    log_std = jnp.clip(head[:, ACTION_DIM:], LOG_STD_MIN, LOG_STD_MAX)
    return mu, jnp.exp(log_std)


# TODO(synk): sample()/mean_action() (Normal.rsample, tanh squash, log_prob)
# are post-forward ops on (mu, std) and are intentionally left to plain JAX.


if __name__ == "__main__":
    key = jax.random.PRNGKey(0)
    pkey, skey = jax.random.split(key)

    # 1) Tiny-batch fast path (ungridded), f32 weights, tight tolerance.
    params_f32 = init_params(pkey, jnp.float32)
    state_small = jax.random.normal(skey, (2, STATE_DIM), jnp.float32)
    mu, std = stochastic_policy_forward(state_small, params_f32)
    jax.block_until_ready((mu, std))
    mu_r, std_r = reference_forward(state_small, params_f32)
    assert mu.shape == (2, ACTION_DIM) and std.shape == (2, ACTION_DIM)
    assert jnp.allclose(mu, mu_r, atol=1e-5, rtol=1e-5)
    assert jnp.allclose(std, std_r, atol=1e-5, rtol=1e-5)
    assert bool(jnp.all(std > 0))

    # 2) Mid-size batch (300 <= SMALL_BATCH) still takes the ungridded path:
    #    no pad/slice wrapper ops, tight f32 tolerance.
    state_mid = jax.random.normal(jax.random.fold_in(skey, 1),
                                  (300, STATE_DIM), jnp.float32)
    mu, std = stochastic_policy_forward(state_mid, params_f32)
    jax.block_until_ready((mu, std))
    mu_r, std_r = reference_forward(state_mid, params_f32)
    assert mu.shape == (300, ACTION_DIM) and std.shape == (300, ACTION_DIM)
    assert jnp.allclose(mu, mu_r, atol=1e-5, rtol=1e-5)
    assert jnp.allclose(std, std_r, atol=1e-5, rtol=1e-5)

    # 3) Grid path with a non-dividing batch (700 -> tb=352, 2 blocks, last
    #    block partial, handled by Pallas boundary masking), f32 weights.
    state_big = jax.random.normal(jax.random.fold_in(skey, 2),
                                  (700, STATE_DIM), jnp.float32)
    mu, std = stochastic_policy_forward(state_big, params_f32)
    jax.block_until_ready((mu, std))
    mu_r, std_r = reference_forward(state_big, params_f32)
    assert mu.shape == (700, ACTION_DIM) and std.shape == (700, ACTION_DIM)
    assert jnp.allclose(mu, mu_r, atol=1e-5, rtol=1e-5)
    assert jnp.allclose(std, std_r, atol=1e-5, rtol=1e-5)

    # 4) Default bf16-weight / f32-accumulate path (looser tolerance for bf16).
    params_bf16 = init_params(pkey)   # default weight_dtype = bf16
    mu, std = stochastic_policy_forward(state_big, params_bf16)
    jax.block_until_ready((mu, std))
    mu_r, std_r = reference_forward(state_big, params_bf16)
    assert jnp.allclose(mu, mu_r, atol=5e-2, rtol=5e-2)
    assert jnp.allclose(std, std_r, atol=5e-2, rtol=5e-2)
    assert bool(jnp.all(std > 0))

    print("KERNEL_OK")
</pallas_src>

<mosaic_0001>
module attributes {stable_mosaic.version = 11 : i64} {
  func.func @_policy_kernel(%arg0: memref<2x16xf32, #tpu.memory_space<vmem>>, %arg1: memref<16x256xf32, #tpu.memory_space<vmem>>, %arg2: memref<1x256xf32, #tpu.memory_space<vmem>>, %arg3: memref<256x256xf32, #tpu.memory_space<vmem>>, %arg4: memref<1x256xf32, #tpu.memory_space<vmem>>, %arg5: memref<256x16xf32, #tpu.memory_space<vmem>>, %arg6: memref<1x16xf32, #tpu.memory_space<vmem>>, %arg7: memref<2x16xf32, #tpu.memory_space<vmem>>) attributes {dimension_semantics = [], scalar_prefetch = 0 : i64, scratch_operands = 0 : i64, tpu.core_type = #tpu.core_type<tc>} {
    %c0 = arith.constant 0 : index
    %c0_0 = arith.constant 0 : index
    %0 = vector.load %arg0[%c0, %c0_0] : memref<2x16xf32, #tpu.memory_space<vmem>>, vector<2x16xf32>
    %c0_1 = arith.constant 0 : index
    %c0_2 = arith.constant 0 : index
    %1 = vector.load %arg1[%c0_1, %c0_2] : memref<16x256xf32, #tpu.memory_space<vmem>>, vector<16x256xf32>
    %cst = arith.constant dense<0.000000e+00> : vector<2x256xf32>
    %2 = tpu.matmul %0, %1, %cst {dimension_numbers = #tpu.dot_dimension_numbers<[1], [0], [0], [1], [0, 0, 1, 1], [], []>} : vector<2x16xf32>, vector<16x256xf32>, vector<2x256xf32> -> vector<2x256xf32>
    %c0_3 = arith.constant 0 : index
    %c0_4 = arith.constant 0 : index
    %3 = vector.load %arg2[%c0_3, %c0_4] : memref<1x256xf32, #tpu.memory_space<vmem>>, vector<1x256xf32>
    %4 = vector.broadcast %3 : vector<1x256xf32> to vector<2x256xf32>
    %5 = arith.addf %2, %4 : vector<2x256xf32>
    %cst_5 = arith.constant 0.000000e+00 : f32
    %6 = vector.broadcast %cst_5 : f32 to vector<2x256xf32>
    %7 = arith.maximumf %5, %6 : vector<2x256xf32>
    %c0_6 = arith.constant 0 : index
    %c0_7 = arith.constant 0 : index
    %8 = vector.load %arg3[%c0_6, %c0_7] : memref<256x256xf32, #tpu.memory_space<vmem>>, vector<256x256xf32>
    %cst_8 = arith.constant dense<0.000000e+00> : vector<2x256xf32>
    %9 = tpu.matmul %7, %8, %cst_8 {dimension_numbers = #tpu.dot_dimension_numbers<[1], [0], [0], [1], [0, 0, 1, 1], [], []>} : vector<2x256xf32>, vector<256x256xf32>, vector<2x256xf32> -> vector<2x256xf32>
    %c0_9 = arith.constant 0 : index
    %c0_10 = arith.constant 0 : index
    %10 = vector.load %arg4[%c0_9, %c0_10] : memref<1x256xf32, #tpu.memory_space<vmem>>, vector<1x256xf32>
    %11 = vector.broadcast %10 : vector<1x256xf32> to vector<2x256xf32>
    %12 = arith.addf %9, %11 : vector<2x256xf32>
    %cst_11 = arith.constant 0.000000e+00 : f32
    %13 = vector.broadcast %cst_11 : f32 to vector<2x256xf32>
    %14 = arith.maximumf %12, %13 : vector<2x256xf32>
    %c0_12 = arith.constant 0 : index
    %c0_13 = arith.constant 0 : index
    %15 = vector.load %arg5[%c0_12, %c0_13] : memref<256x16xf32, #tpu.memory_space<vmem>>, vector<256x16xf32>
    %cst_14 = arith.constant dense<0.000000e+00> : vector<2x16xf32>
    %16 = tpu.matmul %14, %15, %cst_14 {dimension_numbers = #tpu.dot_dimension_numbers<[1], [0], [0], [1], [0, 0, 1, 1], [], []>} : vector<2x256xf32>, vector<256x16xf32>, vector<2x16xf32> -> vector<2x16xf32>
    %c0_15 = arith.constant 0 : index
    %c0_16 = arith.constant 0 : index
    %17 = vector.load %arg6[%c0_15, %c0_16] : memref<1x16xf32, #tpu.memory_space<vmem>>, vector<1x16xf32>
    %18 = vector.broadcast %17 : vector<1x16xf32> to vector<2x16xf32>
    %19 = arith.addf %16, %18 : vector<2x16xf32>
    %20 = tpu.iota {dimensions = array<i32: 1>} : vector<2x16xi32>
    %cst_17 = arith.constant -2.000000e+01 : f32
    %cst_18 = arith.constant 2.000000e+00 : f32
    %21 = vector.broadcast %cst_17 : f32 to vector<2x16xf32>
    %22 = arith.maximumf %21, %19 : vector<2x16xf32>
    %23 = vector.broadcast %cst_18 : f32 to vector<2x16xf32>
    %24 = arith.minimumf %23, %22 : vector<2x16xf32>
    %25 = math.exp %24 : vector<2x16xf32>
    %c8_i32 = arith.constant 8 : i32
    %26 = vector.broadcast %c8_i32 : i32 to vector<2x16xi32>
    %27 = arith.cmpi sge, %20, %26 : vector<2x16xi32>
    %28 = arith.select %27, %25, %19 : vector<2x16xi1>, vector<2x16xf32>
    %c0_19 = arith.constant 0 : index
    %c0_20 = arith.constant 0 : index
    %29 = vector.load %arg7[%c0_19, %c0_20] : memref<2x16xf32, #tpu.memory_space<vmem>>, vector<2x16xf32>
    tpu.vector_store %arg7[%c0_19, %c0_20], %28 {strides = array<i32>} : memref<2x16xf32, #tpu.memory_space<vmem>>, vector<2x16xf32>,
    return
  }
}

</mosaic_0001>

<llo_original>
// kernel: tpu_custom_call.1
$region0: #{tpu_custom_call.1}
  #allocation0 [shape = 'u32[]', space=smem, size = 0x4, offset = 0x4, fixed_abs, tag = 'smem constant byte address 0x4 - core index']
  #allocation1 [shape = 'u32[144,128]{1,0:T(1,128)}', space=vmem, size = 0x12000, scoped, tag = 'internal scratch']
  %s0 = inlined_call_operand.vmem [shape: f32[2,16], index: 0, kind: input, shape index: {}]
  %s1 = inlined_call_operand.vmem [shape: f32[16,256], index: 1, kind: input, shape index: {}]
  %s2 = inlined_call_operand.vmem [shape: f32[1,256], index: 2, kind: input, shape index: {}]
  %s3 = inlined_call_operand.hbm [shape: f32[256,256], index: 3, kind: input, shape index: {}]
  %s4 = inlined_call_operand.vmem [shape: f32[1,256], index: 4, kind: input, shape index: {}]
  %s5 = inlined_call_operand.vmem [shape: f32[256,16], index: 5, kind: input, shape index: {}]
  %s6 = inlined_call_operand.vmem [shape: f32[1,16], index: 6, kind: input, shape index: {}]
  %s7 = inlined_call_operand.hbm [shape: f32[2,16], index: 7, kind: output, shape index: {}]
  %s8 = sld [smem:[#allocation0]]
  $region42: #{tpu_custom_call.1} parent=0
    _
  %s10 = ssub.s32 1, %s8
  %s11 = scalar_select 0, %s10, %s8
  $region1: #{tpu_custom_call.1} parent=0
    #allocation2 [shape = 'u8[262144]{0}', space=vmem, size = 0x40000, scoped, tag = 'input window, operand 3, single buffered']
    #allocation3 [shape = 's32[1]{0}', space=sflag, size = 0x4, scoped, tag = 'scoped memory for tpu_custom_call.1']
    #allocation4 [shape = 's32[1]{0}', space=sflag, size = 0x4, scoped, tag = 'scoped memory for tpu_custom_call.1']
    #allocation5 [shape = 'u8[1024]{0}', space=vmem, size = 0x400, scoped, tag = 'output window, operand 0, single buffered']
    %12 = vsyncpa [#allocation3], 0
    %13 = vsyncpa [#allocation4], 0
    // Predicated region
    $region2: #{tpu_custom_call.1} parent=1 // pred_check
      _
    $region3: #{tpu_custom_call.1} parent=1 // pred_check_branch
      %15 = sbr.rel (0) target = $region5
    $region4: #{tpu_custom_call.1} parent=1 // pred_region
      _
    $region5: #{tpu_custom_call.1} parent=1 // pred_fallthru
      _
    // Predicated region
    $region6: #{tpu_custom_call.1} parent=1 // pred_check
      _
    $region7: #{tpu_custom_call.1} parent=1 // pred_check_branch
      %17 = sbr.rel (0) target = $region9
    $region8: #{tpu_custom_call.1} parent=1 // pred_region
      _
    $region9: #{tpu_custom_call.1} parent=1 // pred_fallthru
      _
    // Predicated region
    $region10: #{tpu_custom_call.1} parent=1 // pred_check
      _
    $region11: #{tpu_custom_call.1} parent=1 // pred_check_branch
      %19 = sbr.rel (0) target = $region13
    $region12: #{tpu_custom_call.1} parent=1 // pred_region
      _
    $region13: #{tpu_custom_call.1} parent=1 // pred_fallthru
      _
    // Predicated region
    $region14: #{tpu_custom_call.1} parent=1 // pred_check
      _
    $region15: #{tpu_custom_call.1} parent=1 // pred_check_branch
      %21 = sbr.rel (0) target = $region17
    $region16: #{tpu_custom_call.1} parent=1 // pred_region
      %s23 = ssub.s32 8192, 8192
      %24 = vsyncadd [#allocation3], %s23
      %s25 = sshll.u32 [#allocation2], 4
      %s26 = int_to_ptr.vmem [resolvable:$true] %s25
      %31 = dma.hbm_to_vmem [thread:$0]  %s3, 8192, %s26, [#allocation3], 256, 256, 16
    $region17: #{tpu_custom_call.1} parent=1 // pred_fallthru
      _
    // Predicated region
    $region18: #{tpu_custom_call.1} parent=1 // pred_check
      _
    $region19: #{tpu_custom_call.1} parent=1 // pred_check_branch
      %33 = sbr.rel (0) target = $region21
    $region20: #{tpu_custom_call.1} parent=1 // pred_region
      _
    $region21: #{tpu_custom_call.1} parent=1 // pred_fallthru
      _
    // Predicated region
    $region22: #{tpu_custom_call.1} parent=1 // pred_check
      _
    $region23: #{tpu_custom_call.1} parent=1 // pred_check_branch
      %35 = sbr.rel (0) target = $region25
    $region24: #{tpu_custom_call.1} parent=1 // pred_region
      _
    $region25: #{tpu_custom_call.1} parent=1 // pred_fallthru
      _
    // Predicated region
    $region26: #{tpu_custom_call.1} parent=1 // pred_check
      _
    $region27: #{tpu_custom_call.1} parent=1 // pred_check_branch
      %37 = sbr.rel (0) target = $region29
    $region28: #{tpu_custom_call.1} parent=1 // pred_region
      _
    $region29: #{tpu_custom_call.1} parent=1 // pred_fallthru
      _
    // Predicated region
    $region30: #{tpu_custom_call.1} parent=1 // pred_check
      _
    $region31: #{tpu_custom_call.1} parent=1 // pred_check_branch
      %39 = sbr.rel (0) target = $region33
    $region32: #{tpu_custom_call.1} parent=1 // pred_region
      %40 = dma.done [#allocation3], 8192
    $region33: #{tpu_custom_call.1} parent=1 // pred_fallthru
      _
    %v41 = vld [vmem:[%s0] sm:$0x3]
    %v42 = vld [vmem:[%s1] sm:$0xff]
    %v43 = vld [vmem:[%s1 + $0x8] sm:$0xff]
    %v44 = vld [vmem:[%s1 + $0x10] sm:$0xff]
    %v45 = vld [vmem:[%s1 + $0x18] sm:$0xff]
    %v46 = vld [vmem:[%s2] sm:$0x3]
    %v48 = vlaneseq
    %v49 = vshrl.u32 %v48, 7
    %v50 = vsub.s32 0, %v49
    %v51 = vrot.slane %v46, %v50
    %v52 = vlaneseq
    %v53 = vshrl.u32 %v52, 7
    %v54 = vsub.s32 1, %v53
    %v55 = vrot.slane %v46, %v54
    %vm58 = vcmask 130048
    %v60 = vsel %vm58, %v41, 0
    %62 = vmatprep.subr.mxu0 %v43
    %63 = vmatpush1.msra.mxu0 %v42
    %64 = vmatprep.subr.mxu0 %v45
    %65 = vmatpush1.msra.mxu0 %v44
    %66 = vmatprep.subr.mxu0 0.0
    %67 = vmatpush1.msra.mxu0 0.0
    %68 = vmatprep.subr.mxu0 0.0
    %69 = vmatpush1.msra.mxu0 0.0
    %70 = vmatprep.subr.mxu0 0.0
    %71 = vmatpush1.msra.mxu0 0.0
    %72 = vmatprep.subr.mxu0 0.0
    %73 = vmatpush1.msra.mxu0 0.0
    %74 = vmatprep.subr.mxu0 0.0
    %75 = vmatpush1.msra.mxu0 0.0
    %76 = vmatprep.subr.mxu0 0.0
    %77 = vmatpush1.msra.mxu0 0.0
    %78 = vmatprep.subr.mxu0 0.0
    %79 = vmatpush1.msra.mxu0 0.0
    %80 = vmatprep.subr.mxu0 0.0
    %81 = vmatpush1.msra.mxu0 0.0
    %82 = vmatprep.subr.mxu0 0.0
    %83 = vmatpush1.msra.mxu0 0.0
    %84 = vmatprep.subr.mxu0 0.0
    %85 = vmatpush1.msra.mxu0 0.0
    %86 = vmatprep.subr.mxu0 0.0
    %87 = vmatpush1.msra.mxu0 0.0
    %88 = vmatprep.subr.mxu0 0.0
    %89 = vmatpush1.msra.mxu0 0.0
    %90 = vmatprep.subr.mxu0 0.0
    %91 = vmatpush1.msra.mxu0 0.0
    %92 = vmatprep.subr.mxu0 0.0
    %93 = vmatpush1.msra.mxu0 0.0
    %94 = vmatprep.subr.mxu0 0.0
    %95 = vmatpush1.msra.mxu0 0.0
    %96 = vmatprep.subr.mxu0 0.0
    %97 = vmatpush1.msra.mxu0 0.0
    %98 = vmatprep.subr.mxu0 0.0
    %99 = vmatpush1.msra.mxu0 0.0
    %100 = vmatprep.subr.mxu0 0.0
    %101 = vmatpush1.msra.mxu0 0.0
    %102 = vmatprep.subr.mxu0 0.0
    %103 = vmatpush1.msra.mxu0 0.0
    %104 = vmatprep.subr.mxu0 0.0
    %105 = vmatpush1.msra.mxu0 0.0
    %106 = vmatprep.subr.mxu0 0.0
    %107 = vmatpush1.msra.mxu0 0.0
    %108 = vmatprep.subr.mxu0 0.0
    %109 = vmatpush1.msra.mxu0 0.0
    %110 = vmatprep.subr.mxu0 0.0
    %111 = vmatpush1.msra.mxu0 0.0
    %112 = vmatprep.subr.mxu0 0.0
    %113 = vmatpush1.msra.mxu0 0.0
    %114 = vmatprep.subr.mxu0 0.0
    %115 = vmatpush1.msra.mxu0 0.0
    %116 = vmatprep.subr.mxu0 0.0
    %117 = vmatpush1.msra.mxu0 0.0
    %118 = vmatprep.subr.mxu0 0.0
    %119 = vmatpush1.msra.mxu0 0.0
    %120 = vmatprep.subr.mxu0 0.0
    %121 = vmatpush1.msra.mxu0 0.0
    %122 = vmatprep.subr.mxu0 0.0
    %123 = vmatpush1.msra.mxu0 0.0
    %124 = vmatprep.subr.mxu0 0.0
    %125 = vmatpush1.msra.mxu0 0.0
    %126 = vmatprep.mubr.f32.mxu0 0.0
    %127 = vmatmul.mubr.f32.gmra.mrb[0].mxu0 %v60
    %v128 = vpop.f32.mrb[0].mxu0
    %v129 = vadd.f32 %v51, %v128
    %v130 = vpop.f32.mrb[0].mxu0
    %v131 = vadd.f32 %v55, %v130
    %132 = vdwg.mxu0
    %v133 = vmax.f32 %v129, 0.0
    %v134 = vmax.f32 %v131, 0.0
    %v135 = vld [vmem:[#allocation2] sm:$0xff]
    %v136 = vld [vmem:[#allocation2 + $0x8] sm:$0xff]
    %v137 = vld [vmem:[#allocation2 + $0x10] sm:$0xff]
    %v138 = vld [vmem:[#allocation2 + $0x18] sm:$0xff]
    %v139 = vld [vmem:[#allocation2 + $0x20] sm:$0xff]
    %v140 = vld [vmem:[#allocation2 + $0x28] sm:$0xff]
    %v141 = vld [vmem:[#allocation2 + $0x30] sm:$0xff]
    %v142 = vld [vmem:[#allocation2 + $0x38] sm:$0xff]
    %v143 = vld [vmem:[#allocation2 + $0x40] sm:$0xff]
    %v144 = vld [vmem:[#allocation2 + $0x48] sm:$0xff]
    %v145 = vld [vmem:[#allocation2 + $0x50] sm:$0xff]
    %v146 = vld [vmem:[#allocation2 + $0x58] sm:$0xff]
    %v147 = vld [vmem:[#allocation2 + $0x60] sm:$0xff]
    %v148 = vld [vmem:[#allocation2 + $0x68] sm:$0xff]
    %v149 = vld [vmem:[#allocation2 + $0x70] sm:$0xff]
    %v150 = vld [vmem:[#allocation2 + $0x78] sm:$0xff]
    %v151 = vld [vmem:[#allocation2 + $0x80] sm:$0xff]
    %v152 = vld [vmem:[#allocation2 + $0x88] sm:$0xff]
    %v153 = vld [vmem:[#allocation2 + $0x90] sm:$0xff]
    %v154 = vld [vmem:[#allocation2 + $0x98] sm:$0xff]
    %v155 = vld [vmem:[#allocation2 + $0xa0] sm:$0xff]
    %v156 = vld [vmem:[#allocation2 + $0xa8] sm:$0xff]
    %v157 = vld [vmem:[#allocation2 + $0xb0] sm:$0xff]
    %v158 = vld [vmem:[#allocation2 + $0xb8] sm:$0xff]
    %v159 = vld [vmem:[#allocation2 + $0xc0] sm:$0xff]
    %v160 = vld [vmem:[#allocation2 + $0xc8] sm:$0xff]
    %v161 = vld [vmem:[#allocation2 + $0xd0] sm:$0xff]
    %v162 = vld [vmem:[#allocation2 + $0xd8] sm:$0xff]
    %v163 = vld [vmem:[#allocation2 + $0xe0] sm:$0xff]
    %v164 = vld [vmem:[#allocation2 + $0xe8] sm:$0xff]
    %v165 = vld [vmem:[#allocation2 + $0xf0] sm:$0xff]
    %v166 = vld [vmem:[#allocation2 + $0xf8] sm:$0xff]
    %v167 = vld [vmem:[#allocation2 + $0x100] sm:$0xff]
    %v168 = vld [vmem:[#allocation2 + $0x108] sm:$0xff]
    %v169 = vld [vmem:[#allocation2 + $0x110] sm:$0xff]
    %v170 = vld [vmem:[#allocation2 + $0x118] sm:$0xff]
    %v171 = vld [vmem:[#allocation2 + $0x120] sm:$0xff]
    %v172 = vld [vmem:[#allocation2 + $0x128] sm:$0xff]
    %v173 = vld [vmem:[#allocation2 + $0x130] sm:$0xff]
    %v174 = vld [vmem:[#allocation2 + $0x138] sm:$0xff]
    %v175 = vld [vmem:[#allocation2 + $0x140] sm:$0xff]
    %v176 = vld [vmem:[#allocation2 + $0x148] sm:$0xff]
    %v177 = vld [vmem:[#allocation2 + $0x150] sm:$0xff]
    %v178 = vld [vmem:[#allocation2 + $0x158] sm:$0xff]
    %v179 = vld [vmem:[#allocation2 + $0x160] sm:$0xff]
    %v180 = vld [vmem:[#allocation2 + $0x168] sm:$0xff]
    %v181 = vld [vmem:[#allocation2 + $0x170] sm:$0xff]
    %v182 = vld [vmem:[#allocation2 + $0x178] sm:$0xff]
    %v183 = vld [vmem:[#allocation2 + $0x180] sm:$0xff]
    %v184 = vld [vmem:[#allocation2 + $0x188] sm:$0xff]
    %v185 = vld [vmem:[#allocation2 + $0x190] sm:$0xff]
    %v186 = vld [vmem:[#allocation2 + $0x198] sm:$0xff]
    %v187 = vld [vmem:[#allocation2 + $0x1a0] sm:$0xff]
    %v188 = vld [vmem:[#allocation2 + $0x1a8] sm:$0xff]
    %v189 = vld [vmem:[#allocation2 + $0x1b0] sm:$0xff]
    %v190 = vld [vmem:[#allocation2 + $0x1b8] sm:$0xff]
    %v191 = vld [vmem:[#allocation2 + $0x1c0] sm:$0xff]
    %v192 = vld [vmem:[#allocation2 + $0x1c8] sm:$0xff]
    %v193 = vld [vmem:[#allocation2 + $0x1d0] sm:$0xff]
    %v194 = vld [vmem:[#allocation2 + $0x1d8] sm:$0xff]
    %v195 = vld [vmem:[#allocation2 + $0x1e0] sm:$0xff]
    %v196 = vld [vmem:[#allocation2 + $0x1e8] sm:$0xff]
    %v197 = vld [vmem:[#allocation2 + $0x1f0] sm:$0xff]
    %v198 = vld [vmem:[#allocation2 + $0x1f8] sm:$0xff]
    %v199 = vld [vmem:[%s4] sm:$0x3]
    %v201 = vlaneseq
    %v202 = vshrl.u32 %v201, 7
    %v203 = vsub.s32 0, %v202
    %v204 = vrot.slane %v199, %v203
    %v205 = vlaneseq
    %v206 = vshrl.u32 %v205, 7
    %v207 = vsub.s32 1, %v206
    %v208 = vrot.slane %v199, %v207
    %211 = vmatprep.subr.mxu0 %v136
    %212 = vmatpush1.msra.mxu0 %v135
    %213 = vmatprep.subr.mxu0 %v138
    %214 = vmatpush1.msra.mxu0 %v137
    %215 = vmatprep.subr.mxu0 %v140
    %216 = vmatpush1.msra.mxu0 %v139
    %217 = vmatprep.subr.mxu0 %v142
    %218 = vmatpush1.msra.mxu0 %v141
    %219 = vmatprep.subr.mxu0 %v144
    %220 = vmatpush1.msra.mxu0 %v143
    %221 = vmatprep.subr.mxu0 %v146
    %222 = vmatpush1.msra.mxu0 %v145
    %223 = vmatprep.subr.mxu0 %v148
    %224 = vmatpush1.msra.mxu0 %v147
    %225 = vmatprep.subr.mxu0 %v150
    %226 = vmatpush1.msra.mxu0 %v149
    %227 = vmatprep.subr.mxu0 %v152
    %228 = vmatpush1.msra.mxu0 %v151
    %229 = vmatprep.subr.mxu0 %v154
    %230 = vmatpush1.msra.mxu0 %v153
    %231 = vmatprep.subr.mxu0 %v156
    %232 = vmatpush1.msra.mxu0 %v155
    %233 = vmatprep.subr.mxu0 %v158
    %234 = vmatpush1.msra.mxu0 %v157
    %235 = vmatprep.subr.mxu0 %v160
    %236 = vmatpush1.msra.mxu0 %v159
    %237 = vmatprep.subr.mxu0 %v162
    %238 = vmatpush1.msra.mxu0 %v161
    %239 = vmatprep.subr.mxu0 %v164
    %240 = vmatpush1.msra.mxu0 %v163
    %241 = vmatprep.subr.mxu0 %v166
    %242 = vmatpush1.msra.mxu0 %v165
    %243 = vmatprep.subr.mxu0 %v168
    %244 = vmatpush1.msra.mxu0 %v167
    %245 = vmatprep.subr.mxu0 %v170
    %246 = vmatpush1.msra.mxu0 %v169
    %247 = vmatprep.subr.mxu0 %v172
    %248 = vmatpush1.msra.mxu0 %v171
    %249 = vmatprep.subr.mxu0 %v174
    %250 = vmatpush1.msra.mxu0 %v173
    %251 = vmatprep.subr.mxu0 %v176
    %252 = vmatpush1.msra.mxu0 %v175
    %253 = vmatprep.subr.mxu0 %v178
    %254 = vmatpush1.msra.mxu0 %v177
    %255 = vmatprep.subr.mxu0 %v180
    %256 = vmatpush1.msra.mxu0 %v179
    %257 = vmatprep.subr.mxu0 %v182
    %258 = vmatpush1.msra.mxu0 %v181
    %259 = vmatprep.subr.mxu0 %v184
    %260 = vmatpush1.msra.mxu0 %v183
    %261 = vmatprep.subr.mxu0 %v186
    %262 = vmatpush1.msra.mxu0 %v185
    %263 = vmatprep.subr.mxu0 %v188
    %264 = vmatpush1.msra.mxu0 %v187
    %265 = vmatprep.subr.mxu0 %v190
    %266 = vmatpush1.msra.mxu0 %v189
    %267 = vmatprep.subr.mxu0 %v192
    %268 = vmatpush1.msra.mxu0 %v191
    %269 = vmatprep.subr.mxu0 %v194
    %270 = vmatpush1.msra.mxu0 %v193
    %271 = vmatprep.subr.mxu0 %v196
    %272 = vmatpush1.msra.mxu0 %v195
    %273 = vmatprep.subr.mxu0 %v198
    %274 = vmatpush1.msra.mxu0 %v197
    %275 = vmatprep.mubr.f32.mxu0 %v134
    %276 = vmatmul.mubr.f32.gmra.mrb[0].mxu0 %v133
    %v277 = vpop.f32.mrb[0].mxu0
    %v278 = vadd.f32 %v204, %v277
    %v279 = vpop.f32.mrb[0].mxu0
    %v280 = vadd.f32 %v208, %v279
    %281 = vdwg.mxu0
    %v282 = vmax.f32 %v278, 0.0
    %v283 = vmax.f32 %v280, 0.0
    %v284 = vld [vmem:[%s5] sm:$0xff]
    %v285 = vld [vmem:[%s5 + $0x8] sm:$0xff]
    %v286 = vld [vmem:[%s5 + $0x10] sm:$0xff]
    %v287 = vld [vmem:[%s5 + $0x18] sm:$0xff]
    %v288 = vld [vmem:[%s5 + $0x20] sm:$0xff]
    %v289 = vld [vmem:[%s5 + $0x28] sm:$0xff]
    %v290 = vld [vmem:[%s5 + $0x30] sm:$0xff]
    %v291 = vld [vmem:[%s5 + $0x38] sm:$0xff]
    %v292 = vld [vmem:[%s5 + $0x40] sm:$0xff]
    %v293 = vld [vmem:[%s5 + $0x48] sm:$0xff]
    %v294 = vld [vmem:[%s5 + $0x50] sm:$0xff]
    %v295 = vld [vmem:[%s5 + $0x58] sm:$0xff]
    %v296 = vld [vmem:[%s5 + $0x60] sm:$0xff]
    %v297 = vld [vmem:[%s5 + $0x68] sm:$0xff]
    %v298 = vld [vmem:[%s5 + $0x70] sm:$0xff]
    %v299 = vld [vmem:[%s5 + $0x78] sm:$0xff]
    %v300 = vld [vmem:[%s5 + $0x80] sm:$0xff]
    %v301 = vld [vmem:[%s5 + $0x88] sm:$0xff]
    %v302 = vld [vmem:[%s5 + $0x90] sm:$0xff]
    %v303 = vld [vmem:[%s5 + $0x98] sm:$0xff]
    %v304 = vld [vmem:[%s5 + $0xa0] sm:$0xff]
    %v305 = vld [vmem:[%s5 + $0xa8] sm:$0xff]
    %v306 = vld [vmem:[%s5 + $0xb0] sm:$0xff]
    %v307 = vld [vmem:[%s5 + $0xb8] sm:$0xff]
    %v308 = vld [vmem:[%s5 + $0xc0] sm:$0xff]
    %v309 = vld [vmem:[%s5 + $0xc8] sm:$0xff]
    %v310 = vld [vmem:[%s5 + $0xd0] sm:$0xff]
    %v311 = vld [vmem:[%s5 + $0xd8] sm:$0xff]
    %v312 = vld [vmem:[%s5 + $0xe0] sm:$0xff]
    %v313 = vld [vmem:[%s5 + $0xe8] sm:$0xff]
    %v314 = vld [vmem:[%s5 + $0xf0] sm:$0xff]
    %v315 = vld [vmem:[%s5 + $0xf8] sm:$0xff]
    %v316 = vld [vmem:[%s6] sm:$0x1]
    %v318 = vlaneseq
    %v319 = vshrl.u32 %v318, 7
    %v320 = vsub.s32 0, %v319
    %v321 = vrot.slane %v316, %v320
    %323 = vmatprep.subr.mxu0 0.0
    %324 = vmatpush1.msra.mxu0 %v284
    %325 = vmatprep.subr.mxu0 0.0
    %326 = vmatpush1.msra.mxu0 %v285
    %327 = vmatprep.subr.mxu0 0.0
    %328 = vmatpush1.msra.mxu0 %v286
    %329 = vmatprep.subr.mxu0 0.0
    %330 = vmatpush1.msra.mxu0 %v287
    %331 = vmatprep.subr.mxu0 0.0
    %332 = vmatpush1.msra.mxu0 %v288
    %333 = vmatprep.subr.mxu0 0.0
    %334 = vmatpush1.msra.mxu0 %v289
    %335 = vmatprep.subr.mxu0 0.0
    %336 = vmatpush1.msra.mxu0 %v290
    %337 = vmatprep.subr.mxu0 0.0
    %338 = vmatpush1.msra.mxu0 %v291
    %339 = vmatprep.subr.mxu0 0.0
    %340 = vmatpush1.msra.mxu0 %v292
    %341 = vmatprep.subr.mxu0 0.0
    %342 = vmatpush1.msra.mxu0 %v293
    %343 = vmatprep.subr.mxu0 0.0
    %344 = vmatpush1.msra.mxu0 %v294
    %345 = vmatprep.subr.mxu0 0.0
    %346 = vmatpush1.msra.mxu0 %v295
    %347 = vmatprep.subr.mxu0 0.0
    %348 = vmatpush1.msra.mxu0 %v296
    %349 = vmatprep.subr.mxu0 0.0
    %350 = vmatpush1.msra.mxu0 %v297
    %351 = vmatprep.subr.mxu0 0.0
    %352 = vmatpush1.msra.mxu0 %v298
    %353 = vmatprep.subr.mxu0 0.0
    %354 = vmatpush1.msra.mxu0 %v299
    %355 = vmatprep.subr.mxu0 0.0
    %356 = vmatpush1.msra.mxu0 %v300
    %357 = vmatprep.subr.mxu0 0.0
    %358 = vmatpush1.msra.mxu0 %v301
    %359 = vmatprep.subr.mxu0 0.0
    %360 = vmatpush1.msra.mxu0 %v302
    %361 = vmatprep.subr.mxu0 0.0
    %362 = vmatpush1.msra.mxu0 %v303
    %363 = vmatprep.subr.mxu0 0.0
    %364 = vmatpush1.msra.mxu0 %v304
    %365 = vmatprep.subr.mxu0 0.0
    %366 = vmatpush1.msra.mxu0 %v305
    %367 = vmatprep.subr.mxu0 0.0
    %368 = vmatpush1.msra.mxu0 %v306
    %369 = vmatprep.subr.mxu0 0.0
    %370 = vmatpush1.msra.mxu0 %v307
    %371 = vmatprep.subr.mxu0 0.0
    %372 = vmatpush1.msra.mxu0 %v308
    %373 = vmatprep.subr.mxu0 0.0
    %374 = vmatpush1.msra.mxu0 %v309
    %375 = vmatprep.subr.mxu0 0.0
    %376 = vmatpush1.msra.mxu0 %v310
    %377 = vmatprep.subr.mxu0 0.0
    %378 = vmatpush1.msra.mxu0 %v311
    %379 = vmatprep.subr.mxu0 0.0
    %380 = vmatpush1.msra.mxu0 %v312
    %381 = vmatprep.subr.mxu0 0.0
    %382 = vmatpush1.msra.mxu0 %v313
    %383 = vmatprep.subr.mxu0 0.0
    %384 = vmatpush1.msra.mxu0 %v314
    %385 = vmatprep.subr.mxu0 0.0
    %386 = vmatpush1.msra.mxu0 %v315
    %387 = vmatprep.mubr.f32.mxu0 %v283
    %388 = vmatmul.mubr.f32.gmra.mrb[0].mxu0 %v282
    %v389 = vpop.f32.mrb[0].mxu0
    %v390 = vadd.f32 %v321, %v389
    %v391 = vpop.f32.mrb[0].mxu0
    %392 = vdwg.mxu0
    %v393 = vlaneseq
    %v394 = vand.u32 %v393, 127
    %v395 = vmax.f32 %v390, -20.0
    %v396 = vmin.f32 %v395, 2.0
    %v397 = vmul.f32 %v396, 1.442695
    %v398 = vpow.pop %v397
    %vm399 = vcmp.ge.s32.totalorder %v394, 8
    %v400 = vsel %vm399, %v398, %v390
    %vm401 = vcmask 123904
    %402 = vst.msk [vmem:[#allocation5] sm:$0x3] %vm401, %v400
    // Predicated region
    $region34: #{tpu_custom_call.1} parent=1 // pred_check
      _
    $region35: #{tpu_custom_call.1} parent=1 // pred_check_branch
      %404 = sbr.rel (0) target = $region37
    $region36: #{tpu_custom_call.1} parent=1 // pred_region
      %s406 = ssub.s32 32, 32
      %407 = vsyncadd [#allocation4], %s406
      %s409 = sshll.u32 [#allocation5], 4
      %s410 = int_to_ptr.vmem [resolvable:$true] %s409
      %412 = dma.vmem_to_hbm [thread:$0]  %s410, 32, %s7, [#allocation4]
    $region37: #{tpu_custom_call.1} parent=1 // pred_fallthru
      _
    // Predicated region
    $region38: #{tpu_custom_call.1} parent=1 // pred_check
      _
    $region39: #{tpu_custom_call.1} parent=1 // pred_check_branch
      %414 = sbr.rel (0) target = $region41
    $region40: #{tpu_custom_call.1} parent=1 // pred_region
      %415 = dma.done [#allocation4], 32
    $region41: #{tpu_custom_call.1} parent=1 // pred_fallthru
      _
    %416 = vsyncpa [#allocation3], 1
    %417 = vsyncpa [#allocation4], 1

</llo_original>
